<compile_context>
chip_gen: v7x
topology: tpu7x:2x2x1
jax: 0.10.0
libtpu: 0.0.40
codegen_flags: <defaults>
</compile_context>

<pallas_src>
import numpy as np
import jax
import jax.numpy as jnp
from jax.experimental import pallas as pl
from jax.experimental.pallas import tpu as pltpu

BN_EPS = 1e-5
LN_EPS = 1e-5
NUM_SCALES = 2  # DEFAULT_NUM_SCALES


def _mtfm_kernel(x_ref, w_ref, rows_ref, o_ref):
    """One grid step: a block of batch elements, flattened to (Bblk*N, H) rows."""
    f32 = jnp.float32
    bblk, n, h = x_ref.shape
    nr = bblk * n

    # Packed per-channel row vectors.  The shift terms already contain the conv
    # bias, the eval-mode BatchNorm shift and the softmax fusion weight
    # (alpha > 0, so alpha * ReLU(z) == ReLU(alpha * z) and alpha commutes with
    # the linear interpolation); the matching per-channel scales were folded
    # into the bf16 weight stack at trace time.
    t0 = rows_ref[0:1, :]     # scale-0 shift
    t1 = rows_ref[1:2, :]     # scale-1 shift
    bf = rows_ref[2:3, :]     # fusion Linear bias
    lng = rows_ref[3:4, :]    # LayerNorm gamma
    lnb = rows_ref[4:5, :]    # LayerNorm beta

    x = x_ref[...].reshape(nr, h).astype(jnp.bfloat16)

    # --- scale 0: Conv1d(k=1) == pointwise channel matmul; BN(eval)+alpha folded.
    f0 = jnp.maximum(jnp.dot(x, w_ref[0], preferred_element_type=f32) + t0, 0.0)

    # --- scale 1: Conv1d(k=2, padding=1) as two channel matmuls (the two taps).
    ya = jnp.dot(x, w_ref[1], preferred_element_type=f32)     # tap k = 0
    yb = jnp.dot(x, w_ref[2], preferred_element_type=f32)     # tap k = 1

    # Node index j within each batch element (flattened row r = b*n + j).
    if bblk == 1:
        j = jax.lax.broadcasted_iota(jnp.int32, (nr, h), 0)
    else:
        j = jax.lax.broadcasted_iota(jnp.int32, (bblk, n, h), 1).reshape(nr, h)

    # Padded conv output: pre[t] = ya[t-1] + yb[t] for t = 0..n (zero pad at both
    # ends).  The (n+1)->n linear interpolation only ever reads the two windows
    # pre[0:n] and pre[1:n+1], so build them with sublane rolls + masks (no
    # structural matmuls; masks also keep batch blocks independent).
    ya_dn = jnp.where(j >= 1, pltpu.roll(ya, 1, axis=0), 0.0)            # ya[t-1]
    yb_up = jnp.where(j <= n - 2, pltpu.roll(yb, nr - 1, axis=0), 0.0)   # yb[t+1]
    g_lo = jnp.maximum(ya_dn + yb + t1, 0.0)    # BN+ReLU of pre[0:n]
    g_hi = jnp.maximum(ya + yb_up + t1, 0.0)    # BN+ReLU of pre[1:n+1]

    # F.interpolate(mode='linear', align_corners=False), n+1 -> n:
    # i0 = j, i1 = j + 1, lam_j = (j + 0.5) / n.
    lam = (j.astype(f32) + 0.5) * (1.0 / n)
    i1 = g_lo * (1.0 - lam) + g_hi * lam

    # --- softmax-weighted fusion (alphas pre-folded) + Linear + LayerNorm + ReLU.
    fused = (f0 + i1).astype(jnp.bfloat16)
    y = jnp.dot(fused, w_ref[3], preferred_element_type=f32) + bf
    mu = jnp.mean(y, axis=-1, keepdims=True)
    var = jnp.mean(y * y, axis=-1, keepdims=True) - mu * mu      # single-pass LN
    y = (y - mu) * jax.lax.rsqrt(var + LN_EPS)
    y = jnp.maximum(y * lng + lnb, 0.0)
    o_ref[...] = y.reshape(bblk, n, h).astype(o_ref.dtype)


def mtfm_forward(x, p):
    B, N, H = x.shape
    f32 = jnp.float32

    # Trace-time constant folding:
    #   eval-mode BN -> per-channel scale/shift; conv bias folded into the shift;
    #   softmax fusion weights alpha (strictly positive -- assumption documented
    #   above) folded into both; the scales then folded into the weight columns.
    alpha = jax.nn.softmax(p["fusion_weight"].astype(f32))

    def fold(conv_b, gamma, beta, rmean, rvar, a):
        s = gamma / jnp.sqrt(rvar + BN_EPS)
        return a * s, a * (conv_b * s + beta - rmean * s)

    sc0, t0 = fold(p["conv0_b"], p["bn0_gamma"], p["bn0_beta"],
                   p["bn0_rmean"], p["bn0_rvar"], alpha[0])
    sc1, t1 = fold(p["conv1_b"], p["bn1_gamma"], p["bn1_beta"],
                   p["bn1_rmean"], p["bn1_rvar"], alpha[1])

    # (in_ch, out_ch) weights with per-output-channel scales folded in, packed as
    # a single (4, H, H) bf16 stack -> one weight input / one DMA per step.
    weights = jnp.stack([
        p["conv0_w"][:, :, 0].T * sc0[None, :],
        p["conv1_w"][:, :, 0].T * sc1[None, :],
        p["conv1_w"][:, :, 1].T * sc1[None, :],
        p["lin_w"].T,
    ], axis=0).astype(jnp.bfloat16)

    zero = jnp.zeros((H,), f32)
    rows = jnp.stack([t0, t1, p["lin_b"], p["ln_gamma"], p["ln_beta"],
                      zero, zero, zero], axis=0).astype(f32)       # (8, H)

    # Batch blocking: 2 grid steps (parallel) keep both v7x TensorCores busy while
    # each step fuses B/2 batch elements worth of rows into the matmuls.
    bblk = B // 2 if (B % 2 == 0 and B >= 2) else 1
    grid = (B // bblk,)

    return pl.pallas_call(
        _mtfm_kernel,
        out_shape=jax.ShapeDtypeStruct((B, N, H), f32),
        grid=grid,
        in_specs=[
            pl.BlockSpec((bblk, N, H), lambda b: (b, 0, 0)),
            pl.BlockSpec((4, H, H), lambda b: (0, 0, 0)),
            pl.BlockSpec((8, H), lambda b: (0, 0)),
        ],
        out_specs=pl.BlockSpec((bblk, N, H), lambda b: (b, 0, 0)),
        compiler_params=pltpu.CompilerParams(dimension_semantics=("parallel",)),
    )(x.astype(f32), weights, rows)


def mtfm_reference(x, p):
    """Plain-JAX (f32) reference mirroring the PyTorch forward (eval mode)."""
    B, N, H = x.shape
    xt = jnp.transpose(x, (0, 2, 1))                       # (B, H, N)

    def bn_relu(z, gamma, beta, rmean, rvar):
        z = (z - rmean[None, :, None]) / jnp.sqrt(rvar + BN_EPS)[None, :, None]
        z = z * gamma[None, :, None] + beta[None, :, None]
        return jnp.maximum(z, 0.0)

    # scale 0: Conv1d(k=1)
    f0 = jnp.einsum("oc,bcn->bon", p["conv0_w"][:, :, 0], xt) + p["conv0_b"][None, :, None]
    f0 = bn_relu(f0, p["bn0_gamma"], p["bn0_beta"], p["bn0_rmean"], p["bn0_rvar"])

    # scale 1: Conv1d(k=2, padding=1) -> length N+1
    xp = jnp.pad(xt, ((0, 0), (0, 0), (1, 1)))
    f1 = (jnp.einsum("oc,bcn->bon", p["conv1_w"][:, :, 0], xp[:, :, : N + 1])
          + jnp.einsum("oc,bcn->bon", p["conv1_w"][:, :, 1], xp[:, :, 1: N + 2])
          + p["conv1_b"][None, :, None])
    f1 = bn_relu(f1, p["bn1_gamma"], p["bn1_beta"], p["bn1_rmean"], p["bn1_rvar"])

    # F.interpolate(size=N, mode='linear', align_corners=False)
    in_size = N + 1
    scale = in_size / N
    j = np.arange(N)
    coord = np.maximum((j + 0.5) * scale - 0.5, 0.0)
    i0 = np.minimum(np.floor(coord).astype(np.int32), in_size - 1)
    i1 = np.minimum(i0 + 1, in_size - 1)
    lam = jnp.asarray((coord - i0).astype(np.float32))
    i1f = f1[:, :, i0] * (1.0 - lam) + f1[:, :, i1] * lam

    alpha = jax.nn.softmax(p["fusion_weight"])
    fused = alpha[0] * f0 + alpha[1] * i1f                 # (B, H, N)
    fused = jnp.transpose(fused, (0, 2, 1))                # (B, N, H)

    y = fused @ p["lin_w"].T + p["lin_b"]
    mu = jnp.mean(y, axis=-1, keepdims=True)
    var = jnp.mean((y - mu) ** 2, axis=-1, keepdims=True)
    y = (y - mu) / jnp.sqrt(var + LN_EPS) * p["ln_gamma"] + p["ln_beta"]
    return jnp.maximum(y, 0.0)


if __name__ == "__main__":
    B, N, H = 2, 16, 32       # (batch, num_nodes, hidden_dim)
    key = jax.random.PRNGKey(0)
    ks = jax.random.split(key, 20)

    p = {
        "conv0_w": 0.2 * jax.random.normal(ks[0], (H, H, 1), jnp.float32),
        "conv0_b": 0.1 * jax.random.normal(ks[1], (H,), jnp.float32),
        "bn0_gamma": 1.0 + 0.1 * jax.random.normal(ks[2], (H,), jnp.float32),
        "bn0_beta": 0.1 * jax.random.normal(ks[3], (H,), jnp.float32),
        "bn0_rmean": 0.1 * jax.random.normal(ks[4], (H,), jnp.float32),
        "bn0_rvar": jax.random.uniform(ks[5], (H,), jnp.float32, 0.5, 1.5),
        "conv1_w": 0.2 * jax.random.normal(ks[6], (H, H, 2), jnp.float32),
        "conv1_b": 0.1 * jax.random.normal(ks[7], (H,), jnp.float32),
        "bn1_gamma": 1.0 + 0.1 * jax.random.normal(ks[8], (H,), jnp.float32),
        "bn1_beta": 0.1 * jax.random.normal(ks[9], (H,), jnp.float32),
        "bn1_rmean": 0.1 * jax.random.normal(ks[10], (H,), jnp.float32),
        "bn1_rvar": jax.random.uniform(ks[11], (H,), jnp.float32, 0.5, 1.5),
        "fusion_weight": jnp.ones((NUM_SCALES,), jnp.float32),  # as in __init__
        "lin_w": 0.2 * jax.random.normal(ks[12], (H, H), jnp.float32),
        "lin_b": 0.1 * jax.random.normal(ks[13], (H,), jnp.float32),
        "ln_gamma": 1.0 + 0.1 * jax.random.normal(ks[14], (H,), jnp.float32),
        "ln_beta": 0.1 * jax.random.normal(ks[15], (H,), jnp.float32),
    }
    x = jax.random.normal(ks[16], (B, N, H), jnp.float32)

    out = jax.block_until_ready(mtfm_forward(x, p))
    ref = jax.block_until_ready(mtfm_reference(x, p))

    assert out.shape == (B, N, H)
    err_max = float(jnp.max(jnp.abs(out - ref)))
    err_mean = float(jnp.mean(jnp.abs(out - ref)))
    # bf16 MXU operands (f32 accumulation) vs. the pure-f32 reference -> slightly
    # looser tolerance than a full-f32 kernel would need.
    assert err_max < 5e-2 and err_mean < 1e-2, (
        f"mismatch vs reference: max={err_max}, mean={err_mean}")
    print("KERNEL_OK")
</pallas_src>

<mosaic_0001>
module attributes {stable_mosaic.version = 11 : i64} {
  func.func @_mtfm_kernel(%arg0: i32, %arg1: memref<1x16x32xf32, #tpu.memory_space<vmem>>, %arg2: memref<4x32x32xbf16, #tpu.memory_space<vmem>>, %arg3: memref<8x32xf32, #tpu.memory_space<vmem>>, %arg4: memref<1x16x32xf32, #tpu.memory_space<vmem>>) attributes {dimension_semantics = [#tpu.dimension_semantics<parallel>], iteration_bounds = array<i64: 2>, scalar_prefetch = 0 : i64, scratch_operands = 0 : i64, tpu.core_type = #tpu.core_type<tc>, window_params = [{transform_indices = @transform_0, window_bounds = array<i64: 1, 16, 32>}, {pipeline_mode = #tpu.pipeline_mode<synchronous>, transform_indices = @transform_1, window_bounds = array<i64: 4, 32, 32>}, {pipeline_mode = #tpu.pipeline_mode<synchronous>, transform_indices = @transform_2, window_bounds = array<i64: 8, 32>}, {transform_indices = @transform_3, window_bounds = array<i64: 1, 16, 32>}]} {
    %c0 = arith.constant 0 : index
    %c0_0 = arith.constant 0 : index
    %0 = vector.load %arg3[%c0, %c0_0] : memref<8x32xf32, #tpu.memory_space<vmem>>, vector<1x32xf32>
    %c1 = arith.constant 1 : index
    %c0_1 = arith.constant 0 : index
    %1 = vector.load %arg3[%c1, %c0_1] : memref<8x32xf32, #tpu.memory_space<vmem>>, vector<1x32xf32>
    %c2 = arith.constant 2 : index
    %c0_2 = arith.constant 0 : index
    %2 = vector.load %arg3[%c2, %c0_2] : memref<8x32xf32, #tpu.memory_space<vmem>>, vector<1x32xf32>
    %c3 = arith.constant 3 : index
    %c0_3 = arith.constant 0 : index
    %3 = vector.load %arg3[%c3, %c0_3] : memref<8x32xf32, #tpu.memory_space<vmem>>, vector<1x32xf32>
    %c4 = arith.constant 4 : index
    %c0_4 = arith.constant 0 : index
    %4 = vector.load %arg3[%c4, %c0_4] : memref<8x32xf32, #tpu.memory_space<vmem>>, vector<1x32xf32>
    %c0_5 = arith.constant 0 : index
    %c0_6 = arith.constant 0 : index
    %c0_7 = arith.constant 0 : index
    %5 = vector.load %arg1[%c0_5, %c0_6, %c0_7] : memref<1x16x32xf32, #tpu.memory_space<vmem>>, vector<1x16x32xf32>
    %6 = vector.shape_cast %5 : vector<1x16x32xf32> to vector<16x32xf32>
    %7 = arith.truncf %6 : vector<16x32xf32> to vector<16x32xbf16>
    %c0_8 = arith.constant 0 : index
    %c0_9 = arith.constant 0 : index
    %c0_10 = arith.constant 0 : index
    %8 = vector.load %arg2[%c0_8, %c0_9, %c0_10] : memref<4x32x32xbf16, #tpu.memory_space<vmem>>, vector<1x32x32xbf16>
    %9 = vector.shape_cast %8 : vector<1x32x32xbf16> to vector<32x32xbf16>
    %cst = arith.constant dense<0.000000e+00> : vector<16x32xf32>
    %10 = tpu.matmul %7, %9, %cst {dimension_numbers = #tpu.dot_dimension_numbers<[1], [0], [0], [1], [0, 0, 1, 1], [], []>} : vector<16x32xbf16>, vector<32x32xbf16>, vector<16x32xf32> -> vector<16x32xf32>
    %11 = vector.broadcast %0 : vector<1x32xf32> to vector<16x32xf32>
    %12 = arith.addf %10, %11 : vector<16x32xf32>
    %cst_11 = arith.constant 0.000000e+00 : f32
    %13 = vector.broadcast %cst_11 : f32 to vector<16x32xf32>
    %14 = arith.maximumf %12, %13 : vector<16x32xf32>
    %c1_12 = arith.constant 1 : index
    %c0_13 = arith.constant 0 : index
    %c0_14 = arith.constant 0 : index
    %15 = vector.load %arg2[%c1_12, %c0_13, %c0_14] : memref<4x32x32xbf16, #tpu.memory_space<vmem>>, vector<1x32x32xbf16>
    %16 = vector.shape_cast %15 : vector<1x32x32xbf16> to vector<32x32xbf16>
    %cst_15 = arith.constant dense<0.000000e+00> : vector<16x32xf32>
    %17 = tpu.matmul %7, %16, %cst_15 {dimension_numbers = #tpu.dot_dimension_numbers<[1], [0], [0], [1], [0, 0, 1, 1], [], []>} : vector<16x32xbf16>, vector<32x32xbf16>, vector<16x32xf32> -> vector<16x32xf32>
    %c2_16 = arith.constant 2 : index
    %c0_17 = arith.constant 0 : index
    %c0_18 = arith.constant 0 : index
    %18 = vector.load %arg2[%c2_16, %c0_17, %c0_18] : memref<4x32x32xbf16, #tpu.memory_space<vmem>>, vector<1x32x32xbf16>
    %19 = vector.shape_cast %18 : vector<1x32x32xbf16> to vector<32x32xbf16>
    %cst_19 = arith.constant dense<0.000000e+00> : vector<16x32xf32>
    %20 = tpu.matmul %7, %19, %cst_19 {dimension_numbers = #tpu.dot_dimension_numbers<[1], [0], [0], [1], [0, 0, 1, 1], [], []>} : vector<16x32xbf16>, vector<32x32xbf16>, vector<16x32xf32> -> vector<16x32xf32>
    %21 = tpu.iota {dimensions = array<i32: 0>} : vector<16x32xi32>
    %c1_i32 = arith.constant 1 : i32
    %22 = vector.broadcast %c1_i32 : i32 to vector<16x32xi32>
    %23 = arith.cmpi sge, %21, %22 : vector<16x32xi32>
    %c1_i32_20 = arith.constant 1 : i32
    %24 = tpu.dynamic_rotate %17 by %c1_i32_20 dim 0 : vector<16x32xf32>, i32 -> vector<16x32xf32>
    %cst_21 = arith.constant 0.000000e+00 : f32
    %25 = vector.broadcast %cst_21 : f32 to vector<16x32xf32>
    %26 = arith.select %23, %24, %25 : vector<16x32xi1>, vector<16x32xf32>
    %c14_i32 = arith.constant 14 : i32
    %27 = vector.broadcast %c14_i32 : i32 to vector<16x32xi32>
    %28 = arith.cmpi sle, %21, %27 : vector<16x32xi32>
    %c15_i32 = arith.constant 15 : i32
    %29 = tpu.dynamic_rotate %20 by %c15_i32 dim 0 : vector<16x32xf32>, i32 -> vector<16x32xf32>
    %cst_22 = arith.constant 0.000000e+00 : f32
    %30 = vector.broadcast %cst_22 : f32 to vector<16x32xf32>
    %31 = arith.select %28, %29, %30 : vector<16x32xi1>, vector<16x32xf32>
    %32 = arith.addf %26, %20 : vector<16x32xf32>
    %33 = vector.broadcast %1 : vector<1x32xf32> to vector<16x32xf32>
    %34 = arith.addf %32, %33 : vector<16x32xf32>
    %cst_23 = arith.constant 0.000000e+00 : f32
    %35 = vector.broadcast %cst_23 : f32 to vector<16x32xf32>
    %36 = arith.maximumf %34, %35 : vector<16x32xf32>
    %37 = arith.addf %17, %31 : vector<16x32xf32>
    %38 = vector.broadcast %1 : vector<1x32xf32> to vector<16x32xf32>
    %39 = arith.addf %37, %38 : vector<16x32xf32>
    %cst_24 = arith.constant 0.000000e+00 : f32
    %40 = vector.broadcast %cst_24 : f32 to vector<16x32xf32>
    %41 = arith.maximumf %39, %40 : vector<16x32xf32>
    %42 = arith.sitofp %21 : vector<16x32xi32> to vector<16x32xf32>
    %cst_25 = arith.constant 5.000000e-01 : f32
    %43 = vector.broadcast %cst_25 : f32 to vector<16x32xf32>
    %44 = arith.addf %42, %43 : vector<16x32xf32>
    %cst_26 = arith.constant 6.250000e-02 : f32
    %45 = vector.broadcast %cst_26 : f32 to vector<16x32xf32>
    %46 = arith.mulf %44, %45 : vector<16x32xf32>
    %cst_27 = arith.constant 1.000000e+00 : f32
    %47 = vector.broadcast %cst_27 : f32 to vector<16x32xf32>
    %48 = arith.subf %47, %46 : vector<16x32xf32>
    %49 = arith.mulf %36, %48 : vector<16x32xf32>
    %50 = arith.mulf %41, %46 : vector<16x32xf32>
    %51 = arith.addf %49, %50 : vector<16x32xf32>
    %52 = arith.addf %14, %51 : vector<16x32xf32>
    %53 = arith.truncf %52 : vector<16x32xf32> to vector<16x32xbf16>
    %c3_28 = arith.constant 3 : index
    %c0_29 = arith.constant 0 : index
    %c0_30 = arith.constant 0 : index
    %54 = vector.load %arg2[%c3_28, %c0_29, %c0_30] : memref<4x32x32xbf16, #tpu.memory_space<vmem>>, vector<1x32x32xbf16>
    %55 = vector.shape_cast %54 : vector<1x32x32xbf16> to vector<32x32xbf16>
    %cst_31 = arith.constant dense<0.000000e+00> : vector<16x32xf32>
    %56 = tpu.matmul %53, %55, %cst_31 {dimension_numbers = #tpu.dot_dimension_numbers<[1], [0], [0], [1], [0, 0, 1, 1], [], []>} : vector<16x32xbf16>, vector<32x32xbf16>, vector<16x32xf32> -> vector<16x32xf32>
    %57 = vector.broadcast %2 : vector<1x32xf32> to vector<16x32xf32>
    %58 = arith.addf %56, %57 : vector<16x32xf32>
    %cst_32 = arith.constant dense<0.000000e+00> : vector<16xf32>
    %59 = vector.multi_reduction <add>, %58, %cst_32 [1] : vector<16x32xf32> to vector<16xf32>
    %60 = vector.shape_cast %59 : vector<16xf32> to vector<16x1xf32>
    %cst_33 = arith.constant 3.200000e+01 : f32
    %61 = vector.broadcast %cst_33 : f32 to vector<16x1xf32>
    %62 = arith.divf %60, %61 : vector<16x1xf32>
    %63 = arith.mulf %58, %58 : vector<16x32xf32>
    %cst_34 = arith.constant dense<0.000000e+00> : vector<16xf32>
    %64 = vector.multi_reduction <add>, %63, %cst_34 [1] : vector<16x32xf32> to vector<16xf32>
    %65 = vector.shape_cast %64 : vector<16xf32> to vector<16x1xf32>
    %cst_35 = arith.constant 3.200000e+01 : f32
    %66 = vector.broadcast %cst_35 : f32 to vector<16x1xf32>
    %67 = arith.divf %65, %66 : vector<16x1xf32>
    %68 = arith.mulf %62, %62 : vector<16x1xf32>
    %69 = arith.subf %67, %68 : vector<16x1xf32>
    %70 = vector.broadcast %62 : vector<16x1xf32> to vector<16x32xf32>
    %71 = arith.subf %58, %70 : vector<16x32xf32>
    %cst_36 = arith.constant 9.99999974E-6 : f32
    %72 = vector.broadcast %cst_36 : f32 to vector<16x1xf32>
    %73 = arith.addf %69, %72 : vector<16x1xf32>
    %74 = math.rsqrt %73 : vector<16x1xf32>
    %75 = vector.broadcast %74 : vector<16x1xf32> to vector<16x32xf32>
    %76 = arith.mulf %71, %75 : vector<16x32xf32>
    %77 = vector.broadcast %3 : vector<1x32xf32> to vector<16x32xf32>
    %78 = arith.mulf %76, %77 : vector<16x32xf32>
    %79 = vector.broadcast %4 : vector<1x32xf32> to vector<16x32xf32>
    %80 = arith.addf %78, %79 : vector<16x32xf32>
    %cst_37 = arith.constant 0.000000e+00 : f32
    %81 = vector.broadcast %cst_37 : f32 to vector<16x32xf32>
    %82 = arith.maximumf %80, %81 : vector<16x32xf32>
    %83 = vector.shape_cast %82 : vector<16x32xf32> to vector<1x16x32xf32>
    %c0_38 = arith.constant 0 : index
    %c0_39 = arith.constant 0 : index
    %c0_40 = arith.constant 0 : index
    %84 = vector.load %arg4[%c0_38, %c0_39, %c0_40] : memref<1x16x32xf32, #tpu.memory_space<vmem>>, vector<1x16x32xf32>
    tpu.vector_store %arg4[%c0_38, %c0_39, %c0_40], %83 {strides = array<i32>} : memref<1x16x32xf32, #tpu.memory_space<vmem>>, vector<1x16x32xf32>,
    return
  }
  func.func @transform_0(%arg0: i32) -> (i32, i32, i32) {
    %c0_i32 = arith.constant 0 : i32
    %c0_i32_0 = arith.constant 0 : i32
    %c0_i32_1 = arith.constant 0 : i32
    return %arg0, %c0_i32, %c0_i32_0 : i32, i32, i32
  }
  func.func @transform_1(%arg0: i32) -> (i32, i32, i32) {
    %c0_i32 = arith.constant 0 : i32
    %c0_i32_0 = arith.constant 0 : i32
    %c0_i32_1 = arith.constant 0 : i32
    %c0_i32_2 = arith.constant 0 : i32
    return %c0_i32, %c0_i32_0, %c0_i32_1 : i32, i32, i32
  }
  func.func @transform_2(%arg0: i32) -> (i32, i32) {
    %c0_i32 = arith.constant 0 : i32
    %c0_i32_0 = arith.constant 0 : i32
    %c0_i32_1 = arith.constant 0 : i32
    return %c0_i32, %c0_i32_0 : i32, i32
  }
  func.func @transform_3(%arg0: i32) -> (i32, i32, i32) {
    %c0_i32 = arith.constant 0 : i32
    %c0_i32_0 = arith.constant 0 : i32
    %c0_i32_1 = arith.constant 0 : i32
    return %arg0, %c0_i32, %c0_i32_0 : i32, i32, i32
  }
}

</mosaic_0001>

<llo_original>
// kernel: tpu_custom_call.1
$region0: #{tpu_custom_call.1}
  #allocation0 [shape = 'u32[]', space=smem, size = 0x4, offset = 0x4, fixed_abs, tag = 'smem constant byte address 0x4 - core index']
  #allocation1 [shape = 'u32[144,128]{1,0:T(1,128)}', space=vmem, size = 0x12000, scoped, tag = 'internal scratch']
  %s0 = inlined_call_operand.hbm [shape: f32[2,16,32], index: 0, kind: input, shape index: {}]
  %s1 = inlined_call_operand.hbm [shape: bf16[4,32,32], index: 1, kind: input, shape index: {}]
  %s2 = inlined_call_operand.hbm [shape: f32[8,32], index: 2, kind: input, shape index: {}]
  %s3 = inlined_call_operand.hbm [shape: f32[2,16,32], index: 3, kind: output, shape index: {}]
  %s4 = sld [smem:[#allocation0]]
  $region57: #{tpu_custom_call.1} parent=0
    _
  %s6 = ssub.s32 1, %s4
  %s7 = scalar_select 0, %s6, %s4
  $region1: #{tpu_custom_call.1} parent=0
    #allocation2 [shape = 'u8[16384]{0}', space=vmem, size = 0x4000, scoped, tag = 'input window, operand 0']
    #allocation3 [shape = 's32[2]{0}', space=sflag, size = 0x8, scoped, tag = 'scoped memory for tpu_custom_call.1']
    #allocation4 [shape = 's32[2]{0}', space=sflag, size = 0x8, scoped, tag = 'scoped memory for tpu_custom_call.1']
    #allocation5 [shape = 'u8[32768]{0}', space=vmem, size = 0x8000, scoped, tag = 'input window, operand 1, single buffered']
    #allocation6 [shape = 's32[1]{0}', space=sflag, size = 0x4, scoped, tag = 'scoped memory for tpu_custom_call.1']
    #allocation7 [shape = 'u8[4096]{0}', space=vmem, size = 0x1000, scoped, tag = 'input window, operand 2, single buffered']
    #allocation8 [shape = 'u8[16384]{0}', space=vmem, size = 0x4000, scoped, tag = 'output window, operand 0']
    %8 = vsyncpa [#allocation3], 0
    %s9 = scalar_lea.sflag [#allocation3], 1
    %10 = vsyncpa %s9, 0
    %11 = vsyncpa [#allocation6], 0
    %12 = vsyncpa [#allocation4], 0
    %s13 = scalar_lea.sflag [#allocation4], 1
    %14 = vsyncpa %s13, 0
    loop: start=0, step=1, limit=4
    $region2: #{tpu_custom_call.1} parent=1 // loop_pre_header
      _
    $region3: #{tpu_custom_call.1} parent=1 // loop_header
      %s16 = sphi 0, %s20
      %p17 = scmp.ge.s32.totalorder %s16, 4
      %s26 = sphi 0, %s28
      %s29 = sphi 0, %s26
      %s30 = sphi 0, %s29
      %s46 = sphi 0, %s30
      %s50 = sphi 0, %s50
      %s52 = sphi 0, %s50
      %s53 = sphi 0, %s52
      %s67 = sphi 0, %s53
      %s71 = sphi 0, %s71
      %s73 = sphi 0, %s71
      %s74 = sphi 0, %s73
      %s88 = sphi 0, %s74
      %s94 = sphi 0, %s96
      %s97 = sphi 0, %s94
      %s98 = sphi 0, %s97
      %s114 = sphi 0, %s98
    $region4: #{tpu_custom_call.1} parent=1 // loop_header_branch
      %19 = sbr.rel (%p17) target = $region8
    $region5: #{tpu_custom_call.1} parent=1 // loop_body
      %s21 = ssub.s32 %s16, 1
      %s22 = ssub.s32 %s16, 2
      %s23 = sadd.s32 %s16, 1
      %s24 = ssub.s32 %s16, %s23
      %p25 = scmp.eq.s32.totalorder %s24, 0
      %s27 = sadd.s32 %s26, 1
      %s28 = scalar_select %p25, %s26, %s27
      %p31 = pneg %p25
      %p32 = scmp.eq.s32.totalorder %s16, 1
      %p33 = por %p31, %p32
      %p34 = scmp.ne.s32.totalorder %s26, %s29
      %p35 = scmp.eq.s32.totalorder %s16, 0
      %p36 = por %p34, %p35
      %p37 = scmp.ne.s32.totalorder %s26, %s29
      %p38 = scmp.eq.s32.totalorder %s21, 1
      %p39 = por %p37, %p38
      %p40 = scmp.ne.s32.totalorder %s29, %s30
      %p41 = scmp.eq.s32.totalorder %s21, 0
      %p42 = por %p40, %p41
      %p43 = scmp.ne.s32.totalorder %s29, %s30
      %p44 = scmp.eq.s32.totalorder %s22, 1
      %p45 = por %p43, %p44
      %p47 = scmp.ne.s32.totalorder %s30, %s46
      %p48 = scmp.eq.s32.totalorder %s22, 0
      %p49 = por %p47, %p48
      %s51 = sadd.s32 %s50, 1
      %p54 = scmp.eq.s32.totalorder %s16, 1
      %p55 = scmp.ne.s32.totalorder %s50, %s52
      %p56 = scmp.eq.s32.totalorder %s16, 0
      %p57 = por %p55, %p56
      %p58 = scmp.ne.s32.totalorder %s50, %s52
      %p59 = scmp.eq.s32.totalorder %s21, 1
      %p60 = por %p58, %p59
      %p61 = scmp.ne.s32.totalorder %s52, %s53
      %p62 = scmp.eq.s32.totalorder %s21, 0
      %p63 = por %p61, %p62
      %p64 = scmp.ne.s32.totalorder %s52, %s53
      %p65 = scmp.eq.s32.totalorder %s22, 1
      %p66 = por %p64, %p65
      %p68 = scmp.ne.s32.totalorder %s53, %s67
      %p69 = scmp.eq.s32.totalorder %s22, 0
      %p70 = por %p68, %p69
      %s72 = sadd.s32 %s71, 1
      %p75 = scmp.eq.s32.totalorder %s16, 1
      %p76 = scmp.ne.s32.totalorder %s71, %s73
      %p77 = scmp.eq.s32.totalorder %s16, 0
      %p78 = por %p76, %p77
      %p79 = scmp.ne.s32.totalorder %s71, %s73
      %p80 = scmp.eq.s32.totalorder %s21, 1
      %p81 = por %p79, %p80
      %p82 = scmp.ne.s32.totalorder %s73, %s74
      %p83 = scmp.eq.s32.totalorder %s21, 0
      %p84 = por %p82, %p83
      %p85 = scmp.ne.s32.totalorder %s73, %s74
      %p86 = scmp.eq.s32.totalorder %s22, 1
      %p87 = por %p85, %p86
      %p89 = scmp.ne.s32.totalorder %s74, %s88
      %p90 = scmp.eq.s32.totalorder %s22, 0
      %p91 = por %p89, %p90
      %s92 = ssub.s32 %s16, %s23
      %p93 = scmp.eq.s32.totalorder %s92, 0
      %s95 = sadd.s32 %s94, 1
      %s96 = scalar_select %p93, %s94, %s95
      %p99 = pneg %p93
      %p100 = scmp.eq.s32.totalorder %s16, 1
      %p101 = por %p99, %p100
      %p102 = scmp.ne.s32.totalorder %s94, %s97
      %p103 = scmp.eq.s32.totalorder %s16, 0
      %p104 = por %p102, %p103
      %p105 = scmp.ne.s32.totalorder %s94, %s97
      %p106 = scmp.eq.s32.totalorder %s21, 1
      %p107 = por %p105, %p106
      %p108 = scmp.ne.s32.totalorder %s97, %s98
      %p109 = scmp.eq.s32.totalorder %s21, 0
      %p110 = por %p108, %p109
      %p111 = scmp.ne.s32.totalorder %s97, %s98
      %p112 = scmp.eq.s32.totalorder %s22, 1
      %p113 = por %p111, %p112
      %p115 = scmp.ne.s32.totalorder %s98, %s114
      %p116 = scmp.eq.s32.totalorder %s22, 0
      %p117 = por %p115, %p116
      %p118 = scmp.le.s32.totalorder 1, %s16
      %p119 = scmp.lt.s32.totalorder %s16, 3
      %p120 = pnand %p118, %p119
      %p121 = pneg %p120
      // Predicated region
      $region9: #{tpu_custom_call.1} parent=5 // pred_check
        _
      $region10: #{tpu_custom_call.1} parent=5 // pred_check_branch
        %123 = sbr.rel (%p120) target = $region12
      $region11: #{tpu_custom_call.1} parent=5 // pred_region
        %s124 = ssub.s32 %s16, 1
        // Predicated region
        $region13: #{tpu_custom_call.1} parent=11 // pred_check
          %p125 = pneg %p63
        $region14: #{tpu_custom_call.1} parent=11 // pred_check_branch
          %127 = sbr.rel (%p125) target = $region16
        $region15: #{tpu_custom_call.1} parent=11 // pred_region
          %s129 = ssub.s32 1024, 1024
          %130 = vsyncadd [#allocation6], %s129
          %s131 = sshll.u32 [#allocation5], 4
          %s132 = int_to_ptr.vmem [resolvable:$true] %s131
          %137 = dma.hbm_to_vmem [thread:$0]  %s1, 1024, %s132, [#allocation6], 64, 64, 4
        $region16: #{tpu_custom_call.1} parent=11 // pred_fallthru
          _
        // Predicated region
        $region17: #{tpu_custom_call.1} parent=11 // pred_check
          %p138 = pneg %p84
        $region18: #{tpu_custom_call.1} parent=11 // pred_check_branch
          %140 = sbr.rel (%p138) target = $region20
        $region19: #{tpu_custom_call.1} parent=11 // pred_region
          %s142 = ssub.s32 128, 128
          %143 = vsyncadd [#allocation6], %s142
          %s145 = sshll.u32 [#allocation7], 4
          %s146 = int_to_ptr.vmem [resolvable:$true] %s145
          %148 = dma.hbm_to_vmem [thread:$0]  %s2, 128, %s146, [#allocation6]
        $region20: #{tpu_custom_call.1} parent=11 // pred_fallthru
          _
      $region12: #{tpu_custom_call.1} parent=5 // pred_fallthru
        _
      %p149 = scmp.lt.s32.totalorder %s16, 2
      // Predicated region
      $region21: #{tpu_custom_call.1} parent=5 // pred_check
        %p150 = pneg %p149
      $region22: #{tpu_custom_call.1} parent=5 // pred_check_branch
        %152 = sbr.rel (%p150) target = $region24
      $region23: #{tpu_custom_call.1} parent=5 // pred_region
        // Predicated region
        $region25: #{tpu_custom_call.1} parent=23 // pred_check
          %p153 = pneg %p36
        $region26: #{tpu_custom_call.1} parent=23 // pred_check_branch
          %155 = sbr.rel (%p153) target = $region28
        $region27: #{tpu_custom_call.1} parent=23 // pred_region
          %s156 = sand.u32 %s26, 1
          %s157 = scalar_lea.sflag [#allocation3], %s156
          %s158 = sand.u32 %s26, 1
          %s159 = smul.addr %s158, 16
          %s160 = scalar_lea.vmem [#allocation2], %s159
          %s162 = ssub.s32 256, 256
          %163 = vsyncadd %s157, %s162
          %s164 = smul.addr %s16, 2
          %s165 = smul.addr %s164, 128
          %s166 = scalar_lea.hbm %s0, %s165
          %s167 = sshll.u32 %s160, 4
          %s168 = int_to_ptr.vmem [resolvable:$true] %s167
          %173 = dma.hbm_to_vmem [thread:$0]  %s166, 256, %s168, %s157, 128, 128, 8
        $region28: #{tpu_custom_call.1} parent=23 // pred_fallthru
          _
      $region24: #{tpu_custom_call.1} parent=5 // pred_fallthru
        _
      %p174 = scmp.le.s32.totalorder 1, %s16
      %p175 = scmp.lt.s32.totalorder %s16, 3
      %p176 = pnand %p174, %p175
      %p177 = pneg %p176
      // Predicated region
      $region29: #{tpu_custom_call.1} parent=5 // pred_check
        _
      $region30: #{tpu_custom_call.1} parent=5 // pred_check_branch
        %179 = sbr.rel (%p176) target = $region32
      $region31: #{tpu_custom_call.1} parent=5 // pred_region
        %s180 = ssub.s32 %s16, 1
        %s181 = sand.u32 %s29, 1
        %s182 = scalar_lea.sflag [#allocation3], %s181
        %s183 = sand.u32 %s29, 1
        %s184 = smul.addr %s183, 16
        %s185 = scalar_lea.vmem [#allocation2], %s184
        // Predicated region
        $region33: #{tpu_custom_call.1} parent=31 // pred_check
          %p186 = pneg %p42
        $region34: #{tpu_custom_call.1} parent=31 // pred_check_branch
          %188 = sbr.rel (%p186) target = $region36
        $region35: #{tpu_custom_call.1} parent=31 // pred_region
          %189 = dma.done %s182, 256
        $region36: #{tpu_custom_call.1} parent=31 // pred_fallthru
          _
        // Predicated region
        $region37: #{tpu_custom_call.1} parent=31 // pred_check
          %p190 = pneg %p63
        $region38: #{tpu_custom_call.1} parent=31 // pred_check_branch
          %192 = sbr.rel (%p190) target = $region40
        $region39: #{tpu_custom_call.1} parent=31 // pred_region
          %193 = dma.done [#allocation6], 1024
        $region40: #{tpu_custom_call.1} parent=31 // pred_fallthru
          _
        // Predicated region
        $region41: #{tpu_custom_call.1} parent=31 // pred_check
          %p194 = pneg %p84
        $region42: #{tpu_custom_call.1} parent=31 // pred_check_branch
          %196 = sbr.rel (%p194) target = $region44
        $region43: #{tpu_custom_call.1} parent=31 // pred_region
          %197 = dma.done [#allocation6], 128
        $region44: #{tpu_custom_call.1} parent=31 // pred_fallthru
          _
        %s198 = sand.u32 %s29, 1
        %s199 = scalar_lea.sflag [#allocation3], %s198
        %s200 = sand.u32 %s29, 1
        %s201 = smul.addr %s200, 16
        %s202 = scalar_lea.vmem [#allocation2], %s201
        %p203 = pneg %p42
        %p204 = pneg %p39
        %p205 = pneg %p63
        %p206 = pneg %p60
        %p207 = pneg %p84
        %p208 = pneg %p81
        %p209 = pneg %p110
        %p210 = pneg %p107
        %s211 = sand.u32 %s97, 1
        %s212 = scalar_lea.sflag [#allocation4], %s211
        %s213 = sand.u32 %s97, 1
        %s214 = smul.addr %s213, 16
        %s215 = scalar_lea.vmem [#allocation8], %s214
        %v217 = vld [vmem:[#allocation7] sm:$0x1]
        %v218 = vld [vmem:[#allocation7 + $0x1] sm:$0x1]
        %v219 = vld [vmem:[#allocation7 + $0x2] sm:$0x1]
        %v220 = vld [vmem:[#allocation7 + $0x3] sm:$0x1]
        %v221 = vld [vmem:[#allocation7 + $0x4] sm:$0x1]
        %v222 = vld [vmem:[%s185] sm:$0xff]
        %v223 = vld [vmem:[%s185 + $0x8] sm:$0xff]
        %v224 = vpack.c.bf16 %v223, %v222
        %v225 = vld [vmem:[#allocation5] sm:$0xf]
        %v226 = vld [vmem:[#allocation5 + $0x4] sm:$0xf]
        %v227 = vld [vmem:[#allocation5 + $0x8] sm:$0xf]
        %v228 = vld [vmem:[#allocation5 + $0xc] sm:$0xf]
        %v229 = vlaneseq
        %v230 = vshrl.u32 %v229, 7
        %v231 = vsub.s32 0, %v230
        %v232 = vrot.slane %v217, %v231
        %v237 = vunpack.c.l.b16 %v225
        %v238 = vunpack.c.l.b16 %v226
        %v239 = vunpack.c.l.b16 %v227
        %v240 = vunpack.c.l.b16 %v228
        %v241 = vpack.c.b16 %v238, %v237
        %v242 = vpack.c.b16 %v240, %v239
        %vm245 = vcmask 261120
        %v247 = vsel %vm245, %v224, 0
        %249 = vmatprep.subr.bf16.mxu0 0
        %250 = vmatpush1.bf16.msra.mxu0 %v241
        %251 = vmatprep.subr.bf16.mxu0 0
        %252 = vmatpush1.bf16.msra.mxu0 %v242
        %253 = vmatprep.subr.bf16.mxu0 0
        %254 = vmatpush1.bf16.msra.mxu0 0
        %255 = vmatprep.subr.bf16.mxu0 0
        %256 = vmatpush1.bf16.msra.mxu0 0
        %257 = vmatprep.subr.bf16.mxu0 0
        %258 = vmatpush1.bf16.msra.mxu0 0
        %259 = vmatprep.subr.bf16.mxu0 0
        %260 = vmatpush1.bf16.msra.mxu0 0
        %261 = vmatprep.subr.bf16.mxu0 0
        %262 = vmatpush1.bf16.msra.mxu0 0
        %263 = vmatprep.subr.bf16.mxu0 0
        %264 = vmatpush1.bf16.msra.mxu0 0
        %265 = vmatprep.subr.bf16.mxu0 0
        %266 = vmatpush1.bf16.msra.mxu0 0
        %267 = vmatprep.subr.bf16.mxu0 0
        %268 = vmatpush1.bf16.msra.mxu0 0
        %269 = vmatprep.subr.bf16.mxu0 0
        %270 = vmatpush1.bf16.msra.mxu0 0
        %271 = vmatprep.subr.bf16.mxu0 0
        %272 = vmatpush1.bf16.msra.mxu0 0
        %273 = vmatprep.subr.bf16.mxu0 0
        %274 = vmatpush1.bf16.msra.mxu0 0
        %275 = vmatprep.subr.bf16.mxu0 0
        %276 = vmatpush1.bf16.msra.mxu0 0
        %277 = vmatprep.subr.bf16.mxu0 0
        %278 = vmatpush1.bf16.msra.mxu0 0
        %279 = vmatprep.subr.bf16.mxu0 0
        %280 = vmatpush1.bf16.msra.mxu0 0
        %281 = vmatprep.mubr.bf16.mxu0 0
        %282 = vmatmul.mubr.bf16.gmra.mrb[0].mxu0 %v247
        %v283 = vpop.f32.mrb[0].mxu0
        %v284 = vadd.f32 %v232, %v283
        %v285 = vpop.f32.mrb[0].mxu0
        %v286 = vpop.f32.mrb[0].mxu0
        %v287 = vadd.f32 %v232, %v286
        %v288 = vpop.f32.mrb[0].mxu0
        %289 = vdwg.mxu0
        %v290 = vmax.f32 %v284, 0.0
        %v291 = vmax.f32 %v287, 0.0
        %s292 = scalar_lea.vmem [#allocation5], 16
        %v293 = vld [vmem:[%s292] sm:$0xf]
        %v294 = vld [vmem:[%s292 + $0x4] sm:$0xf]
        %v295 = vld [vmem:[%s292 + $0x8] sm:$0xf]
        %v296 = vld [vmem:[%s292 + $0xc] sm:$0xf]
        %v301 = vunpack.c.l.b16 %v293
        %v302 = vunpack.c.l.b16 %v294
        %v303 = vunpack.c.l.b16 %v295
        %v304 = vunpack.c.l.b16 %v296
        %v305 = vpack.c.b16 %v302, %v301
        %v306 = vpack.c.b16 %v304, %v303
        %309 = vmatprep.subr.bf16.mxu0 0
        %310 = vmatpush1.bf16.msra.mxu0 %v305
        %311 = vmatprep.subr.bf16.mxu0 0
        %312 = vmatpush1.bf16.msra.mxu0 %v306
        %313 = vmatprep.subr.bf16.mxu0 0
        %314 = vmatpush1.bf16.msra.mxu0 0
        %315 = vmatprep.subr.bf16.mxu0 0
        %316 = vmatpush1.bf16.msra.mxu0 0
        %317 = vmatprep.subr.bf16.mxu0 0
        %318 = vmatpush1.bf16.msra.mxu0 0
        %319 = vmatprep.subr.bf16.mxu0 0
        %320 = vmatpush1.bf16.msra.mxu0 0
        %321 = vmatprep.subr.bf16.mxu0 0
        %322 = vmatpush1.bf16.msra.mxu0 0
        %323 = vmatprep.subr.bf16.mxu0 0
        %324 = vmatpush1.bf16.msra.mxu0 0
        %325 = vmatprep.subr.bf16.mxu0 0
        %326 = vmatpush1.bf16.msra.mxu0 0
        %327 = vmatprep.subr.bf16.mxu0 0
        %328 = vmatpush1.bf16.msra.mxu0 0
        %329 = vmatprep.subr.bf16.mxu0 0
        %330 = vmatpush1.bf16.msra.mxu0 0
        %331 = vmatprep.subr.bf16.mxu0 0
        %332 = vmatpush1.bf16.msra.mxu0 0
        %333 = vmatprep.subr.bf16.mxu0 0
        %334 = vmatpush1.bf16.msra.mxu0 0
        %335 = vmatprep.subr.bf16.mxu0 0
        %336 = vmatpush1.bf16.msra.mxu0 0
        %337 = vmatprep.subr.bf16.mxu0 0
        %338 = vmatpush1.bf16.msra.mxu0 0
        %339 = vmatprep.subr.bf16.mxu0 0
        %340 = vmatpush1.bf16.msra.mxu0 0
        %341 = vmatprep.mubr.bf16.mxu0 0
        %342 = vmatmul.mubr.bf16.gmra.mrb[0].mxu0 %v247
        %v343 = vpop.f32.mrb[0].mxu0
        %v344 = vadd.f32 0.0, %v343
        %v345 = vpop.f32.mrb[0].mxu0
        %v346 = vpop.f32.mrb[0].mxu0
        %v347 = vadd.f32 0.0, %v346
        %v348 = vpop.f32.mrb[0].mxu0
        %349 = vdwg.mxu0
        %s350 = scalar_lea.vmem [#allocation5], 32
        %v351 = vld [vmem:[%s350] sm:$0xf]
        %v352 = vld [vmem:[%s350 + $0x4] sm:$0xf]
        %v353 = vld [vmem:[%s350 + $0x8] sm:$0xf]
        %v354 = vld [vmem:[%s350 + $0xc] sm:$0xf]
        %v359 = vunpack.c.l.b16 %v351
        %v360 = vunpack.c.l.b16 %v352
        %v361 = vunpack.c.l.b16 %v353
        %v362 = vunpack.c.l.b16 %v354
        %v363 = vpack.c.b16 %v360, %v359
        %v364 = vpack.c.b16 %v362, %v361
        %367 = vmatprep.subr.bf16.mxu0 0
        %368 = vmatpush1.bf16.msra.mxu0 %v363
        %369 = vmatprep.subr.bf16.mxu0 0
        %370 = vmatpush1.bf16.msra.mxu0 %v364
        %371 = vmatprep.subr.bf16.mxu0 0
        %372 = vmatpush1.bf16.msra.mxu0 0
        %373 = vmatprep.subr.bf16.mxu0 0
        %374 = vmatpush1.bf16.msra.mxu0 0
        %375 = vmatprep.subr.bf16.mxu0 0
        %376 = vmatpush1.bf16.msra.mxu0 0
        %377 = vmatprep.subr.bf16.mxu0 0
        %378 = vmatpush1.bf16.msra.mxu0 0
        %379 = vmatprep.subr.bf16.mxu0 0
        %380 = vmatpush1.bf16.msra.mxu0 0
        %381 = vmatprep.subr.bf16.mxu0 0
        %382 = vmatpush1.bf16.msra.mxu0 0
        %383 = vmatprep.subr.bf16.mxu0 0
        %384 = vmatpush1.bf16.msra.mxu0 0
        %385 = vmatprep.subr.bf16.mxu0 0
        %386 = vmatpush1.bf16.msra.mxu0 0
        %387 = vmatprep.subr.bf16.mxu0 0
        %388 = vmatpush1.bf16.msra.mxu0 0
        %389 = vmatprep.subr.bf16.mxu0 0
        %390 = vmatpush1.bf16.msra.mxu0 0
        %391 = vmatprep.subr.bf16.mxu0 0
        %392 = vmatpush1.bf16.msra.mxu0 0
        %393 = vmatprep.subr.bf16.mxu0 0
        %394 = vmatpush1.bf16.msra.mxu0 0
        %395 = vmatprep.subr.bf16.mxu0 0
        %396 = vmatpush1.bf16.msra.mxu0 0
        %397 = vmatprep.subr.bf16.mxu0 0
        %398 = vmatpush1.bf16.msra.mxu0 0
        %399 = vmatprep.mubr.bf16.mxu0 0
        %400 = vmatmul.mubr.bf16.gmra.mrb[0].mxu0 %v247
        %v401 = vpop.f32.mrb[0].mxu0
        %v402 = vadd.f32 0.0, %v401
        %v403 = vpop.f32.mrb[0].mxu0
        %v404 = vpop.f32.mrb[0].mxu0
        %v405 = vadd.f32 0.0, %v404
        %v406 = vpop.f32.mrb[0].mxu0
        %407 = vdwg.mxu0
        %v408 = vlaneseq
        %v409 = vshrl.u32 %v408, 7
        %v410 = vadd.s32 %v409, 8
        %vm411 = vcmp.ge.s32.totalorder %v409, 1
        %vm412 = vcmp.ge.s32.totalorder %v410, 1
        %v413 = vrot.slane %v344, 7
        %v414 = vrot.slane %v347, 7
        %vm415 = vcmp.lt.s32.totalorder %v409, 1
        %v416 = vsel %vm415, %v413, %v414
        %v417 = vsel %vm415, %v414, %v413
        %v418 = vsel %vm411, %v417, 0.0
        %v419 = vsel %vm412, %v416, 0.0
        %vm420 = vcmp.le.s32.totalorder %v409, 14
        %vm421 = vcmp.le.s32.totalorder %v410, 14
        %v422 = vrot.slane %v402, 1
        %v423 = vrot.slane %v405, 1
        %vm424 = vcmp.lt.s32.totalorder %v409, 7
        %v425 = vsel %vm424, %v422, %v423
        %v426 = vsel %vm424, %v423, %v422
        %v427 = vsel %vm420, %v425, 0.0
        %v428 = vsel %vm421, %v426, 0.0
        %v429 = vadd.f32 %v418, %v402
        %v430 = vadd.f32 %v419, %v405
        %v431 = vlaneseq
        %v432 = vshrl.u32 %v431, 7
        %v433 = vsub.s32 0, %v432
        %v434 = vrot.slane %v218, %v433
        %v435 = vadd.f32 %v429, %v434
        %v436 = vadd.f32 %v430, %v434
        %v437 = vmax.f32 %v435, 0.0
        %v438 = vmax.f32 %v436, 0.0
        %v439 = vadd.f32 %v344, %v427
        %v440 = vadd.f32 %v347, %v428
        %v441 = vadd.f32 %v439, %v434
        %v442 = vadd.f32 %v440, %v434
        %v443 = vmax.f32 %v441, 0.0
        %v444 = vmax.f32 %v442, 0.0
        %v445 = vcvt.s32.f32 %v409
        %v446 = vcvt.s32.f32 %v410
        %v447 = vadd.f32 %v445, 0.5
        %v448 = vadd.f32 %v446, 0.5
        %v449 = vmul.f32 %v447, 0.0625
        %v450 = vmul.f32 %v448, 0.0625
        %v451 = vsub.f32 1.0, %v449
        %v452 = vsub.f32 1.0, %v450
        %v453 = vmul.f32 %v437, %v451
        %v454 = vmul.f32 %v438, %v452
        %v455 = vmul.f32 %v443, %v449
        %v456 = vmul.f32 %v444, %v450
        %v457 = vadd.f32 %v453, %v455
        %v458 = vadd.f32 %v454, %v456
        %v459 = vadd.f32 %v290, %v457
        %v460 = vadd.f32 %v291, %v458
        %v461 = vpack.c.bf16 %v460, %v459
        %s462 = scalar_lea.vmem [#allocation5], 48
        %v463 = vld [vmem:[%s462] sm:$0xf]
        %v464 = vld [vmem:[%s462 + $0x4] sm:$0xf]
        %v465 = vld [vmem:[%s462 + $0x8] sm:$0xf]
        %v466 = vld [vmem:[%s462 + $0xc] sm:$0xf]
        %v467 = vlaneseq
        %v468 = vshrl.u32 %v467, 7
        %v469 = vsub.s32 0, %v468
        %v470 = vrot.slane %v219, %v469
        %v475 = vunpack.c.l.b16 %v463
        %v476 = vunpack.c.l.b16 %v464
        %v477 = vunpack.c.l.b16 %v465
        %v478 = vunpack.c.l.b16 %v466
        %v479 = vpack.c.b16 %v476, %v475
        %v480 = vpack.c.b16 %v478, %v477
        %v484 = vsel %vm245, %v461, 0
        %486 = vmatprep.subr.bf16.mxu0 0
        %487 = vmatpush1.bf16.msra.mxu0 %v479
        %488 = vmatprep.subr.bf16.mxu0 0
        %489 = vmatpush1.bf16.msra.mxu0 %v480
        %490 = vmatprep.subr.bf16.mxu0 0
        %491 = vmatpush1.bf16.msra.mxu0 0
        %492 = vmatprep.subr.bf16.mxu0 0
        %493 = vmatpush1.bf16.msra.mxu0 0
        %494 = vmatprep.subr.bf16.mxu0 0
        %495 = vmatpush1.bf16.msra.mxu0 0
        %496 = vmatprep.subr.bf16.mxu0 0
        %497 = vmatpush1.bf16.msra.mxu0 0
        %498 = vmatprep.subr.bf16.mxu0 0
        %499 = vmatpush1.bf16.msra.mxu0 0
        %500 = vmatprep.subr.bf16.mxu0 0
        %501 = vmatpush1.bf16.msra.mxu0 0
        %502 = vmatprep.subr.bf16.mxu0 0
        %503 = vmatpush1.bf16.msra.mxu0 0
        %504 = vmatprep.subr.bf16.mxu0 0
        %505 = vmatpush1.bf16.msra.mxu0 0
        %506 = vmatprep.subr.bf16.mxu0 0
        %507 = vmatpush1.bf16.msra.mxu0 0
        %508 = vmatprep.subr.bf16.mxu0 0
        %509 = vmatpush1.bf16.msra.mxu0 0
        %510 = vmatprep.subr.bf16.mxu0 0
        %511 = vmatpush1.bf16.msra.mxu0 0
        %512 = vmatprep.subr.bf16.mxu0 0
        %513 = vmatpush1.bf16.msra.mxu0 0
        %514 = vmatprep.subr.bf16.mxu0 0
        %515 = vmatpush1.bf16.msra.mxu0 0
        %516 = vmatprep.subr.bf16.mxu0 0
        %517 = vmatpush1.bf16.msra.mxu0 0
        %518 = vmatprep.mubr.bf16.mxu0 0
        %519 = vmatmul.mubr.bf16.gmra.mrb[0].mxu0 %v484
        %v520 = vpop.f32.mrb[0].mxu0
        %v521 = vadd.f32 %v470, %v520
        %v522 = vpop.f32.mrb[0].mxu0
        %v523 = vpop.f32.mrb[0].mxu0
        %v524 = vadd.f32 %v470, %v523
        %v525 = vpop.f32.mrb[0].mxu0
        %526 = vdwg.mxu0
        %v527 = vsel %vm245, %v521, 0.0
        %528 = vadd.xlane.f32.xlu0 %v527
        %v529 = vpop.xlane.xlu0 %528
        %v530 = vsel %vm245, %v524, 0.0
        %531 = vadd.xlane.f32.xlu0 %v530
        %v532 = vpop.xlane.xlu0 %531
        %v533 = vrcp.pop 32.0
        %v534 = vmul.f32 %v529, %v533
        %v535 = vmul.f32 %v532, %v533
        %v536 = vmul.f32 %v521, %v521
        %v537 = vmul.f32 %v524, %v524
        %v538 = vsel %vm245, %v536, 0.0
        %539 = vadd.xlane.f32.xlu0 %v538
        %v540 = vpop.xlane.xlu0 %539
        %v541 = vsel %vm245, %v537, 0.0
        %542 = vadd.xlane.f32.xlu0 %v541
        %v543 = vpop.xlane.xlu0 %542
        %v544 = vmul.f32 %v540, %v533
        %v545 = vmul.f32 %v543, %v533
        %v546 = vmul.f32 %v534, %v534
        %v547 = vmul.f32 %v535, %v535
        %v548 = vsub.f32 %v544, %v546
        %v549 = vsub.f32 %v545, %v547
        %v550 = vsub.f32 %v521, %v534
        %v551 = vsub.f32 %v524, %v535
        %v552 = vadd.f32 %v548, 1e-05
        %v553 = vadd.f32 %v549, 1e-05
        %v554 = vrsqrt.pop %v552
        %v555 = vrsqrt.pop %v553
        %v556 = vmul.f32 %v550, %v554
        %v557 = vmul.f32 %v551, %v555
        %v558 = vlaneseq
        %v559 = vshrl.u32 %v558, 7
        %v560 = vsub.s32 0, %v559
        %v561 = vrot.slane %v220, %v560
        %v562 = vmul.f32 %v556, %v561
        %v563 = vmul.f32 %v557, %v561
        %v564 = vlaneseq
        %v565 = vshrl.u32 %v564, 7
        %v566 = vsub.s32 0, %v565
        %v567 = vrot.slane %v221, %v566
        %v568 = vadd.f32 %v562, %v567
        %v569 = vadd.f32 %v563, %v567
        %v570 = vmax.f32 %v568, 0.0
        %v571 = vmax.f32 %v569, 0.0
        %572 = vst.msk [vmem:[%s215] sm:$0xff] %vm245, %v570
        %573 = vst.msk [vmem:[%s215 + $0x8] sm:$0xff] %vm245, %v571
        %s574 = sand.u32 %s97, 1
        %s575 = scalar_lea.sflag [#allocation4], %s574
        %s576 = sand.u32 %s97, 1
        %s577 = smul.addr %s576, 16
        %s578 = scalar_lea.vmem [#allocation8], %s577
        // Predicated region
        $region45: #{tpu_custom_call.1} parent=31 // pred_check
          %p579 = pneg %p107
        $region46: #{tpu_custom_call.1} parent=31 // pred_check_branch
          %581 = sbr.rel (%p579) target = $region48
        $region47: #{tpu_custom_call.1} parent=31 // pred_region
          %s583 = ssub.s32 256, 256
          %584 = vsyncadd %s575, %s583
          %s585 = smul.addr %s21, 2
          %s586 = smul.addr %s585, 128
          %s587 = scalar_lea.hbm %s3, %s586
          %s588 = sshll.u32 %s578, 4
          %s589 = int_to_ptr.vmem [resolvable:$true] %s588
          %594 = dma.vmem_to_hbm [thread:$0]  %s589, 256, %s587, %s575, 128, 128, 8
        $region48: #{tpu_custom_call.1} parent=31 // pred_fallthru
          _
      $region32: #{tpu_custom_call.1} parent=5 // pred_fallthru
        _
      %p595 = scmp.le.s32.totalorder 2, %s16
      // Predicated region
      $region49: #{tpu_custom_call.1} parent=5 // pred_check
        %p596 = pneg %p595
      $region50: #{tpu_custom_call.1} parent=5 // pred_check_branch
        %598 = sbr.rel (%p596) target = $region52
      $region51: #{tpu_custom_call.1} parent=5 // pred_region
        %s599 = ssub.s32 %s16, 2
        // Predicated region
        $region53: #{tpu_custom_call.1} parent=51 // pred_check
          %p600 = pneg %p113
        $region54: #{tpu_custom_call.1} parent=51 // pred_check_branch
          %602 = sbr.rel (%p600) target = $region56
        $region55: #{tpu_custom_call.1} parent=51 // pred_region
          %s603 = sand.u32 %s98, 1
          %s604 = scalar_lea.sflag [#allocation4], %s603
          %s605 = sand.u32 %s98, 1
          %s606 = smul.addr %s605, 16
          %s607 = scalar_lea.vmem [#allocation8], %s606
          %608 = dma.done %s604, 256
        $region56: #{tpu_custom_call.1} parent=51 // pred_fallthru
          _
      $region52: #{tpu_custom_call.1} parent=5 // pred_fallthru
        _
    $region6: #{tpu_custom_call.1} parent=1 // loop_footer
      %s20 = sadd.s32 1, %s16
    $region7: #{tpu_custom_call.1} parent=1 // loop_footer_branch
      %15 = sbr.rel target = $region3
    $region8: #{tpu_custom_call.1} parent=1 // loop_exit
      _
    %609 = vsyncpa [#allocation3], 1
    %s610 = scalar_lea.sflag [#allocation3], 1
    %611 = vsyncpa %s610, 1
    %612 = vsyncpa [#allocation6], 1
    %613 = vsyncpa [#allocation4], 1
    %s614 = scalar_lea.sflag [#allocation4], 1
    %615 = vsyncpa %s614, 1

</llo_original>
